<compile_context>
chip_gen: v7x
topology: tpu7x:2x2x1
jax: 0.10.0
libtpu: 0.0.40
codegen_flags: <defaults>
</compile_context>

<pallas_src>
import functools

import jax
import jax.numpy as jnp
from jax.experimental import pallas as pl
from jax.experimental.pallas import tpu as pltpu

LANE = 128


# ---------------------------------------------------------------------------
# Small helpers
# ---------------------------------------------------------------------------
def _round_up(x, m):
    return ((x + m - 1) // m) * m


def _row_tile(n):
    """Largest row tile (multiple of 8) that divides n; fall back to full n."""
    for t in (256, 128, 64, 32, 16, 8):
        if n >= t and n % t == 0:
            return t
    return n


def _vmem_limit_bytes():
    # v7x: 64 MiB VMEM per TensorCore -> cap at 48 MiB; v5e/v6e: 128 MiB -> 96 MiB.
    try:
        kind = jax.devices()[0].device_kind.lower()
    except Exception:
        kind = ""
    if "v7" in kind:
        return 48 * 1024 * 1024
    if "v5" in kind or "v6" in kind:
        return 96 * 1024 * 1024
    return 48 * 1024 * 1024


# ---------------------------------------------------------------------------
# Kernels
# ---------------------------------------------------------------------------
def _proj_kernel(hp, x_ref, w_ref, b_ref, q_ref, k_ref, v_ref, s_ref):
    """Layer-0 projection: one fused matmul -> q|k|v|skip (head-padded layout)."""
    proj = jnp.dot(x_ref[...].astype(jnp.bfloat16), w_ref[...],
                   preferred_element_type=jnp.float32) + b_ref[...]
    q_ref[...] = proj[:, 0 * hp:1 * hp].astype(jnp.bfloat16)   # already * 1/sqrt(C)
    k_ref[...] = proj[:, 1 * hp:2 * hp].astype(jnp.bfloat16)
    v_ref[...] = proj[:, 2 * hp:3 * hp].astype(jnp.bfloat16)
    s_ref[...] = proj[:, 3 * hp:4 * hp]                        # skip/root term, f32


def _attention(heads, cp, q_ref, k_ref, v_ref, s_ref, adj_ref):
    """Multi-head attention for one target-row tile + skip + ELU (f32 result)."""
    edge = adj_ref[...] > 0                                    # [TQ, N] bool (bf16 adj)
    neg = jnp.float32(-1e30)
    head_outs = []
    for hd in range(heads):                                    # static unroll
        lo = hd * cp                                           # 128-aligned -> free view
        q_h = q_ref[:, lo:lo + cp]                             # [TQ, CP] bf16
        k_h = k_ref[:, lo:lo + cp]                             # [N,  CP] bf16
        # score[i,j] = <q_i^h, k_j^h> (scale folded into q); contract lane axis
        score = jax.lax.dot_general(q_h, k_h, (((1,), (1,)), ((), ())),
                                    preferred_element_type=jnp.float32)  # [TQ, N]
        masked = jnp.where(edge, score, neg)
        m = jnp.max(masked, axis=-1, keepdims=True)
        e = jnp.where(edge, jnp.exp(masked - m), jnp.float32(0.0))
        denom = jnp.sum(e, axis=-1, keepdims=True)
        inv = pl.reciprocal(jnp.where(denom == 0.0, jnp.float32(1.0), denom),
                            approx=True)                       # EUP slot
        alpha = (e * inv).astype(jnp.bfloat16)                 # isolated rows -> 0
        v_h = v_ref[:, lo:lo + cp]                             # [N, CP] bf16
        head_outs.append(jnp.dot(alpha, v_h, preferred_element_type=jnp.float32))
    att = head_outs[0] if heads == 1 else jnp.concatenate(head_outs, axis=-1)
    act = s_ref[...] + att
    # ELU (alpha=1); exp only on the clamped-negative branch. Dropout = identity.
    return jnp.where(act > 0, act, jnp.exp(jnp.minimum(act, 0.0)) - 1.0)


def _attn_proj_kernel(heads, cp, hp_next,
                      q_ref, k_ref, v_ref, s_ref, adj_ref, wn_ref, bn_ref,
                      qn_ref, kn_ref, vn_ref, sn_ref):
    """Attention of layer l (+ELU) fused with the projection of layer l+1."""
    h = _attention(heads, cp, q_ref, k_ref, v_ref, s_ref, adj_ref)
    proj = jnp.dot(h.astype(jnp.bfloat16), wn_ref[...],
                   preferred_element_type=jnp.float32) + bn_ref[...]
    qn_ref[...] = proj[:, 0 * hp_next:1 * hp_next].astype(jnp.bfloat16)
    kn_ref[...] = proj[:, 1 * hp_next:2 * hp_next].astype(jnp.bfloat16)
    vn_ref[...] = proj[:, 2 * hp_next:3 * hp_next].astype(jnp.bfloat16)
    sn_ref[...] = proj[:, 3 * hp_next:4 * hp_next]


def _attn_final_kernel(heads, cp,
                       q_ref, k_ref, v_ref, s_ref, adj_ref, wf_ref, bf_ref, o_ref):
    """Last layer attention (+ELU) fused with final Linear + sigmoid (lane-dense out)."""
    h = _attention(heads, cp, q_ref, k_ref, v_ref, s_ref, adj_ref)
    y = jnp.dot(h.astype(jnp.bfloat16), wf_ref[...],
                preferred_element_type=jnp.float32) + bf_ref[...]
    o_ref[...] = 1.0 / (1.0 + jnp.exp(-y))


def _attn_embed_kernel(heads, cp, q_ref, k_ref, v_ref, s_ref, adj_ref, o_ref):
    o_ref[...] = _attention(heads, cp, q_ref, k_ref, v_ref, s_ref, adj_ref)


# ---------------------------------------------------------------------------
# Weight packing (head-padded, 128-lane-aligned segments; done once in the wrapper)
# ---------------------------------------------------------------------------
def _pack_cols(w, heads, c, cp):
    """[rows, heads*c] -> [rows, heads*cp]; each head's c channels at a 128 boundary."""
    out = jnp.zeros((w.shape[0], heads * cp), w.dtype)
    for hd in range(heads):
        out = out.at[:, hd * cp:hd * cp + c].set(w[:, hd * c:(hd + 1) * c])
    return out


def _pad_rows(w, rows_pad):
    return jnp.zeros((rows_pad, w.shape[1]), w.dtype).at[:w.shape[0], :].set(w)


def _headpad_rows(w, heads, c_prev, cp_prev):
    """[heads*c_prev, cols] -> [heads*cp_prev, cols] matching head-padded activations."""
    out = jnp.zeros((heads * cp_prev, w.shape[1]), w.dtype)
    for hd in range(heads):
        out = out.at[hd * cp_prev:hd * cp_prev + c_prev, :].set(
            w[hd * c_prev:(hd + 1) * c_prev, :])
    return out


def _fuse_layer_weights(p, heads, c, cp, row_packer, scale):
    """Concatenate q|k|v|skip into one matmul; fold 1/sqrt(C) into Wq/bq."""
    w = jnp.concatenate([
        _pack_cols(p["wq"] * scale, heads, c, cp),
        _pack_cols(p["wk"], heads, c, cp),
        _pack_cols(p["wv"], heads, c, cp),
        _pack_cols(p["ws"], heads, c, cp)], axis=1)
    b = jnp.concatenate([
        _pack_cols(p["bq"] * scale, heads, c, cp),
        _pack_cols(p["bk"], heads, c, cp),
        _pack_cols(p["bv"], heads, c, cp),
        _pack_cols(p["bs"], heads, c, cp)], axis=1)
    return row_packer(w).astype(jnp.bfloat16), b.astype(jnp.float32)


# ---------------------------------------------------------------------------
# Forward wrapper
# ---------------------------------------------------------------------------
def graph_transformer_forward(x, adj, conv_params, heads, conv_out_dims, wf, bf,
                              return_embeddings=False):
    n, fin = x.shape
    n_layers = len(conv_out_dims)
    cps = [_round_up(c, LANE) for c in conv_out_dims]     # per-head padded width
    hps = [heads * cp for cp in cps]
    tq = _row_tile(n)
    grid = (n // tq,)

    cparams = pltpu.CompilerParams(dimension_semantics=("parallel",),
                                   vmem_limit_bytes=_vmem_limit_bytes())

    def row_spec(width):
        return pl.BlockSpec((tq, width), lambda i: (i, 0))

    def full_spec(shape):
        return pl.BlockSpec(shape, lambda i: (0,) * len(shape))

    # Lane-pad inputs; adjacency as bf16 (single low-precision resident).
    fp0 = _round_up(fin, LANE)
    x_pad = jnp.zeros((n, fp0), jnp.bfloat16).at[:, :fin].set(x.astype(jnp.bfloat16))
    adj_bf = adj.astype(jnp.bfloat16)

    # Pre-pack per-layer fused weights (in real use these would be cached).
    fused = []
    for l, c in enumerate(conv_out_dims):
        scale = float(1.0 / (c ** 0.5))
        if l == 0:
            packer = functools.partial(_pad_rows, rows_pad=fp0)
        else:
            packer = functools.partial(_headpad_rows, heads=heads,
                                       c_prev=conv_out_dims[l - 1],
                                       cp_prev=cps[l - 1])
        fused.append(_fuse_layer_weights(conv_params[l], heads, c, cps[l],
                                         packer, scale))

    # ---- layer 0 projection -------------------------------------------------
    w0, b0 = fused[0]
    hp0 = hps[0]
    qkvs_shapes = lambda hp: (jax.ShapeDtypeStruct((n, hp), jnp.bfloat16),
                              jax.ShapeDtypeStruct((n, hp), jnp.bfloat16),
                              jax.ShapeDtypeStruct((n, hp), jnp.bfloat16),
                              jax.ShapeDtypeStruct((n, hp), jnp.float32))
    q, k, v, s = pl.pallas_call(
        functools.partial(_proj_kernel, hp0),
        grid=grid,
        in_specs=[row_spec(fp0), full_spec(w0.shape), full_spec(b0.shape)],
        out_specs=(row_spec(hp0), row_spec(hp0), row_spec(hp0), row_spec(hp0)),
        out_shape=qkvs_shapes(hp0),
        compiler_params=cparams,
    )(x_pad, w0, b0)

    # ---- intermediate layers: attention(l) + ELU + projection(l+1) ----------
    for l in range(n_layers - 1):
        cp, hp = cps[l], hps[l]
        wn, bn = fused[l + 1]
        hpn = hps[l + 1]
        q, k, v, s = pl.pallas_call(
            functools.partial(_attn_proj_kernel, heads, cp, hpn),
            grid=grid,
            in_specs=[row_spec(hp),              # q row tile
                      full_spec((n, hp)),        # k (all sources, resident)
                      full_spec((n, hp)),        # v (all sources, resident)
                      row_spec(hp),              # skip row tile
                      row_spec(n),               # adj row block (double-buffered)
                      full_spec(wn.shape), full_spec(bn.shape)],
            out_specs=(row_spec(hpn), row_spec(hpn), row_spec(hpn), row_spec(hpn)),
            out_shape=qkvs_shapes(hpn),
            compiler_params=cparams,
        )(q, k, v, s, adj_bf, wn, bn)

    cp_last, hp_last = cps[-1], hps[-1]

    if return_embeddings:
        h_pad = pl.pallas_call(
            functools.partial(_attn_embed_kernel, heads, cp_last),
            grid=grid,
            in_specs=[row_spec(hp_last), full_spec((n, hp_last)),
                      full_spec((n, hp_last)), row_spec(hp_last), row_spec(n)],
            out_specs=row_spec(hp_last),
            out_shape=jax.ShapeDtypeStruct((n, hp_last), jnp.float32),
            compiler_params=cparams,
        )(q, k, v, s, adj_bf)
        c_last = conv_out_dims[-1]
        return h_pad.reshape(n, heads, cp_last)[:, :, :c_last].reshape(n, heads * c_last)

    # ---- last layer: attention + ELU + final Linear + sigmoid ---------------
    num_labels = wf.shape[1]
    lp = _round_up(num_labels, LANE)                       # lane-dense output store
    c_last = conv_out_dims[-1]
    wf_hp = _headpad_rows(wf, heads, c_last, cp_last)
    wf_p = jnp.zeros((hp_last, lp), jnp.bfloat16).at[:, :num_labels].set(
        wf_hp.astype(jnp.bfloat16))
    bf_p = jnp.zeros((1, lp), jnp.float32).at[:, :num_labels].set(bf.astype(jnp.float32))

    out_pad = pl.pallas_call(
        functools.partial(_attn_final_kernel, heads, cp_last),
        grid=grid,
        in_specs=[row_spec(hp_last), full_spec((n, hp_last)), full_spec((n, hp_last)),
                  row_spec(hp_last), row_spec(n),
                  full_spec(wf_p.shape), full_spec(bf_p.shape)],
        out_specs=row_spec(lp),
        out_shape=jax.ShapeDtypeStruct((n, lp), jnp.float32),
        compiler_params=cparams,
    )(q, k, v, s, adj_bf, wf_p, bf_p)
    return out_pad[:, :num_labels]


# ---------------------------------------------------------------------------
# Pure-JAX reference (f32) for a sanity check
# ---------------------------------------------------------------------------
def _reference_forward(x, adj, conv_params, heads, conv_out_dims, wf, bf):
    h = x
    for p, c in zip(conv_params, conv_out_dims):
        q = (h @ p["wq"] + p["bq"]) * (1.0 / (c ** 0.5))
        k = h @ p["wk"] + p["bk"]
        v = h @ p["wv"] + p["bv"]
        skip = h @ p["ws"] + p["bs"]
        outs = []
        for hd in range(heads):
            qh, kh, vh = (t[:, hd * c:(hd + 1) * c] for t in (q, k, v))
            sc = qh @ kh.T
            masked = jnp.where(adj > 0, sc, -1e30)
            m = jnp.max(masked, axis=-1, keepdims=True)
            e = jnp.where(adj > 0, jnp.exp(masked - m), 0.0)
            den = jnp.sum(e, axis=-1, keepdims=True)
            alpha = jnp.where(den > 0, e / jnp.maximum(den, 1e-30), 0.0)
            outs.append(alpha @ vh)
        agg = jnp.concatenate(outs, axis=-1) + skip
        h = jnp.where(agg > 0, agg, jnp.exp(jnp.minimum(agg, 0.0)) - 1.0)
    return jax.nn.sigmoid(h @ wf + bf)


# ---------------------------------------------------------------------------
# Deterministic parameter init (shapes match the PyTorch module's __init__)
# ---------------------------------------------------------------------------
def init_conv_params(key, fin, cout, heads):
    ks = jax.random.split(key, 8)
    hc = heads * cout
    sc = float(1.0 / (fin ** 0.5))
    u = lambda kk, shape: jax.random.uniform(kk, shape, jnp.float32, -sc, sc)
    return dict(wq=u(ks[0], (fin, hc)), bq=u(ks[1], (1, hc)),
                wk=u(ks[2], (fin, hc)), bk=u(ks[3], (1, hc)),
                wv=u(ks[4], (fin, hc)), bv=u(ks[5], (1, hc)),
                ws=u(ks[6], (fin, hc)), bs=u(ks[7], (1, hc)))


if __name__ == "__main__":
    # Module config: GraphTransformer(hidden_channels=8, embedding_size=8,
    #                                 num_features=8, num_labels=4,
    #                                 num_conv_layers=2, heads=2, dropout=0.1)
    N = 24            # nodes (3 row tiles of 8 -> exercises the parallel grid)
    E = 64            # directed edges
    num_features = 8
    hidden_channels = 8
    embedding_size = 8
    heads = 2
    num_labels = 4

    key = jax.random.PRNGKey(0)
    kx, ksrc, ktgt, kc1, kc2, kwf, kbf = jax.random.split(key, 7)

    x = jax.random.normal(kx, (N, num_features), jnp.float32)
    src = jax.random.randint(ksrc, (E,), 0, N)
    tgt = jax.random.randint(ktgt, (E,), 0, N)
    edge_index = jnp.stack([src, tgt])                    # [2, E] reference layout
    # Dense adjacency mask: adj[target, source] = 1 iff edge source -> target.
    adj = jnp.zeros((N, N), jnp.float32).at[tgt, src].set(1.0)

    conv_params = [
        init_conv_params(kc1, num_features, hidden_channels, heads),
        init_conv_params(kc2, hidden_channels * heads, embedding_size, heads),
    ]
    conv_out_dims = [hidden_channels, embedding_size]

    sf = float(1.0 / ((embedding_size * heads) ** 0.5))
    wf = jax.random.uniform(kwf, (embedding_size * heads, num_labels),
                            jnp.float32, -sf, sf)
    bf = jax.random.uniform(kbf, (1, num_labels), jnp.float32, -sf, sf)

    out = graph_transformer_forward(x, adj, conv_params, heads, conv_out_dims, wf, bf)
    out = jax.block_until_ready(out)

    ref = _reference_forward(x, adj, conv_params, heads, conv_out_dims, wf, bf)
    max_err = float(jnp.max(jnp.abs(out - ref)))

    assert out.shape == (N, num_labels)
    assert bool(jnp.all(jnp.isfinite(out)))
    assert bool(jnp.all((out >= 0.0) & (out <= 1.0)))     # sigmoid range
    assert max_err < 5e-2, f"mismatch vs reference: {max_err}"
    print("KERNEL_OK")
</pallas_src>

<mosaic_0001>
module attributes {stable_mosaic.version = 11 : i64} {
  func.func @_proj_kernel(%arg0: i32, %arg1: memref<8x128xbf16, #tpu.memory_space<vmem>>, %arg2: memref<128x1024xbf16, #tpu.memory_space<vmem>>, %arg3: memref<1x1024xf32, #tpu.memory_space<vmem>>, %arg4: memref<8x256xbf16, #tpu.memory_space<vmem>>, %arg5: memref<8x256xbf16, #tpu.memory_space<vmem>>, %arg6: memref<8x256xbf16, #tpu.memory_space<vmem>>, %arg7: memref<8x256xf32, #tpu.memory_space<vmem>>) attributes {dimension_semantics = [#tpu.dimension_semantics<parallel>], iteration_bounds = array<i64: 3>, scalar_prefetch = 0 : i64, scratch_operands = 0 : i64, tpu.core_type = #tpu.core_type<tc>, window_params = [{transform_indices = @transform_0, window_bounds = array<i64: 8, 128>}, {pipeline_mode = #tpu.pipeline_mode<synchronous>, transform_indices = @transform_1, window_bounds = array<i64: 128, 1024>}, {pipeline_mode = #tpu.pipeline_mode<synchronous>, transform_indices = @transform_2, window_bounds = array<i64: 1, 1024>}, {transform_indices = @transform_3, window_bounds = array<i64: 8, 256>}, {transform_indices = @transform_4, window_bounds = array<i64: 8, 256>}, {transform_indices = @transform_5, window_bounds = array<i64: 8, 256>}, {transform_indices = @transform_6, window_bounds = array<i64: 8, 256>}]} {
    %c0 = arith.constant 0 : index
    %c0_0 = arith.constant 0 : index
    %0 = vector.load %arg1[%c0, %c0_0] : memref<8x128xbf16, #tpu.memory_space<vmem>>, vector<8x128xbf16>
    %c0_1 = arith.constant 0 : index
    %c0_2 = arith.constant 0 : index
    %1 = vector.load %arg2[%c0_1, %c0_2] : memref<128x1024xbf16, #tpu.memory_space<vmem>>, vector<128x1024xbf16>
    %cst = arith.constant dense<0.000000e+00> : vector<8x1024xf32>
    %2 = tpu.matmul %0, %1, %cst {dimension_numbers = #tpu.dot_dimension_numbers<[1], [0], [0], [1], [0, 0, 1, 1], [], []>} : vector<8x128xbf16>, vector<128x1024xbf16>, vector<8x1024xf32> -> vector<8x1024xf32>
    %c0_3 = arith.constant 0 : index
    %c0_4 = arith.constant 0 : index
    %3 = vector.load %arg3[%c0_3, %c0_4] : memref<1x1024xf32, #tpu.memory_space<vmem>>, vector<1x1024xf32>
    %4 = vector.broadcast %3 : vector<1x1024xf32> to vector<8x1024xf32>
    %5 = arith.addf %2, %4 : vector<8x1024xf32>
    %6 = vector.extract_strided_slice %5 {offsets = [0, 0], sizes = [8, 256], strides = [1, 1]} : vector<8x1024xf32> to vector<8x256xf32>
    %7 = arith.truncf %6 : vector<8x256xf32> to vector<8x256xbf16>
    %c0_5 = arith.constant 0 : index
    %c0_6 = arith.constant 0 : index
    %8 = vector.load %arg4[%c0_5, %c0_6] : memref<8x256xbf16, #tpu.memory_space<vmem>>, vector<8x256xbf16>
    tpu.vector_store %arg4[%c0_5, %c0_6], %7 {strides = array<i32>} : memref<8x256xbf16, #tpu.memory_space<vmem>>, vector<8x256xbf16>,
    %9 = vector.extract_strided_slice %5 {offsets = [0, 256], sizes = [8, 256], strides = [1, 1]} : vector<8x1024xf32> to vector<8x256xf32>
    %10 = arith.truncf %9 : vector<8x256xf32> to vector<8x256xbf16>
    %c0_7 = arith.constant 0 : index
    %c0_8 = arith.constant 0 : index
    %11 = vector.load %arg5[%c0_7, %c0_8] : memref<8x256xbf16, #tpu.memory_space<vmem>>, vector<8x256xbf16>
    tpu.vector_store %arg5[%c0_7, %c0_8], %10 {strides = array<i32>} : memref<8x256xbf16, #tpu.memory_space<vmem>>, vector<8x256xbf16>,
    %12 = vector.extract_strided_slice %5 {offsets = [0, 512], sizes = [8, 256], strides = [1, 1]} : vector<8x1024xf32> to vector<8x256xf32>
    %13 = arith.truncf %12 : vector<8x256xf32> to vector<8x256xbf16>
    %c0_9 = arith.constant 0 : index
    %c0_10 = arith.constant 0 : index
    %14 = vector.load %arg6[%c0_9, %c0_10] : memref<8x256xbf16, #tpu.memory_space<vmem>>, vector<8x256xbf16>
    tpu.vector_store %arg6[%c0_9, %c0_10], %13 {strides = array<i32>} : memref<8x256xbf16, #tpu.memory_space<vmem>>, vector<8x256xbf16>,
    %15 = vector.extract_strided_slice %5 {offsets = [0, 768], sizes = [8, 256], strides = [1, 1]} : vector<8x1024xf32> to vector<8x256xf32>
    %c0_11 = arith.constant 0 : index
    %c0_12 = arith.constant 0 : index
    %16 = vector.load %arg7[%c0_11, %c0_12] : memref<8x256xf32, #tpu.memory_space<vmem>>, vector<8x256xf32>
    tpu.vector_store %arg7[%c0_11, %c0_12], %15 {strides = array<i32>} : memref<8x256xf32, #tpu.memory_space<vmem>>, vector<8x256xf32>,
    return
  }
  func.func @transform_0(%arg0: i32) -> (i32, i32) {
    %c0_i32 = arith.constant 0 : i32
    %c0_i32_0 = arith.constant 0 : i32
    return %arg0, %c0_i32 : i32, i32
  }
  func.func @transform_1(%arg0: i32) -> (i32, i32) {
    %c0_i32 = arith.constant 0 : i32
    %c0_i32_0 = arith.constant 0 : i32
    %c0_i32_1 = arith.constant 0 : i32
    return %c0_i32, %c0_i32_0 : i32, i32
  }
  func.func @transform_2(%arg0: i32) -> (i32, i32) {
    %c0_i32 = arith.constant 0 : i32
    %c0_i32_0 = arith.constant 0 : i32
    %c0_i32_1 = arith.constant 0 : i32
    return %c0_i32, %c0_i32_0 : i32, i32
  }
  func.func @transform_3(%arg0: i32) -> (i32, i32) {
    %c0_i32 = arith.constant 0 : i32
    %c0_i32_0 = arith.constant 0 : i32
    return %arg0, %c0_i32 : i32, i32
  }
  func.func @transform_4(%arg0: i32) -> (i32, i32) {
    %c0_i32 = arith.constant 0 : i32
    %c0_i32_0 = arith.constant 0 : i32
    return %arg0, %c0_i32 : i32, i32
  }
  func.func @transform_5(%arg0: i32) -> (i32, i32) {
    %c0_i32 = arith.constant 0 : i32
    %c0_i32_0 = arith.constant 0 : i32
    return %arg0, %c0_i32 : i32, i32
  }
  func.func @transform_6(%arg0: i32) -> (i32, i32) {
    %c0_i32 = arith.constant 0 : i32
    %c0_i32_0 = arith.constant 0 : i32
    return %arg0, %c0_i32 : i32, i32
  }
}

</mosaic_0001>

<llo_original>
// kernel: tpu_custom_call.1
$region0: #{tpu_custom_call.1}
  #allocation0 [shape = 'u32[]', space=smem, size = 0x4, offset = 0x4, fixed_abs, tag = 'smem constant byte address 0x4 - core index']
  #allocation1 [shape = 'u32[144,128]{1,0:T(1,128)}', space=vmem, size = 0x12000, scoped, tag = 'internal scratch']
  %s0 = inlined_call_operand.hbm [shape: bf16[24,128], index: 0, kind: input, shape index: {}]
  %s1 = inlined_call_operand.hbm [shape: bf16[128,1024], index: 1, kind: input, shape index: {}]
  %s2 = inlined_call_operand.hbm [shape: f32[1,1024], index: 2, kind: input, shape index: {}]
  %s3 = inlined_call_operand.hbm [shape: bf16[24,256], index: 3, kind: output, shape index: {0}]
  %s4 = inlined_call_operand.hbm [shape: bf16[24,256], index: 4, kind: output, shape index: {1}]
  %s5 = inlined_call_operand.hbm [shape: bf16[24,256], index: 5, kind: output, shape index: {2}]
  %s6 = inlined_call_operand.hbm [shape: f32[24,256], index: 6, kind: output, shape index: {3}]
  %7 = xla_tuple %s3, %s4, %s5, %s6
  %s8 = sld [smem:[#allocation0]]
  $region81: #{tpu_custom_call.1} parent=0
    _
  %s10 = ssub.s32 1, %s8
  %s11 = scalar_select 0, %s10, %s8
  $region1: #{tpu_custom_call.1} parent=0
    #allocation2 [shape = 'u8[4096]{0}', space=vmem, size = 0x1000, scoped, tag = 'input window, operand 0']
    #allocation3 [shape = 's32[2]{0}', space=sflag, size = 0x8, scoped, tag = 'scoped memory for tpu_custom_call.1']
    #allocation4 [shape = 's32[2]{0}', space=sflag, size = 0x8, scoped, tag = 'scoped memory for tpu_custom_call.1']
    #allocation5 [shape = 'u8[262144]{0}', space=vmem, size = 0x40000, scoped, tag = 'input window, operand 1, single buffered']
    #allocation6 [shape = 's32[1]{0}', space=sflag, size = 0x4, scoped, tag = 'scoped memory for tpu_custom_call.1']
    #allocation7 [shape = 'u8[4096]{0}', space=vmem, size = 0x1000, scoped, tag = 'input window, operand 2, single buffered']
    #allocation8 [shape = 'u8[8192]{0}', space=vmem, size = 0x2000, scoped, tag = 'output window, operand 0']
    #allocation9 [shape = 'u8[8192]{0}', space=vmem, size = 0x2000, scoped, tag = 'output window, operand 1']
    #allocation10 [shape = 's32[2]{0}', space=sflag, size = 0x8, scoped, tag = 'scoped memory for tpu_custom_call.1']
    #allocation11 [shape = 'u8[8192]{0}', space=vmem, size = 0x2000, scoped, tag = 'output window, operand 2']
    #allocation12 [shape = 'u8[16384]{0}', space=vmem, size = 0x4000, scoped, tag = 'output window, operand 3']
    #allocation13 [shape = 's32[2]{0}', space=sflag, size = 0x8, scoped, tag = 'scoped memory for tpu_custom_call.1']
    %12 = vsyncpa [#allocation3], 0
    %s13 = scalar_lea.sflag [#allocation3], 1
    %14 = vsyncpa %s13, 0
    %15 = vsyncpa [#allocation6], 0
    %16 = vsyncpa [#allocation4], 0
    %s17 = scalar_lea.sflag [#allocation4], 1
    %18 = vsyncpa %s17, 0
    %19 = vsyncpa [#allocation10], 0
    %s20 = scalar_lea.sflag [#allocation10], 1
    %21 = vsyncpa %s20, 0
    %22 = vsyncpa [#allocation13], 0
    %s23 = scalar_lea.sflag [#allocation13], 1
    %24 = vsyncpa %s23, 0
    loop: start=0, step=1, limit=5
    $region2: #{tpu_custom_call.1} parent=1 // loop_pre_header
      _
    $region3: #{tpu_custom_call.1} parent=1 // loop_header
      %s26 = sphi 0, %s30
      %p27 = scmp.ge.s32.totalorder %s26, 5
      %s36 = sphi 0, %s38
      %s39 = sphi 0, %s36
      %s40 = sphi 0, %s39
      %s56 = sphi 0, %s40
      %s60 = sphi 0, %s60
      %s62 = sphi 0, %s60
      %s63 = sphi 0, %s62
      %s77 = sphi 0, %s63
      %s81 = sphi 0, %s81
      %s83 = sphi 0, %s81
      %s84 = sphi 0, %s83
      %s98 = sphi 0, %s84
      %s104 = sphi 0, %s106
      %s107 = sphi 0, %s104
      %s108 = sphi 0, %s107
      %s124 = sphi 0, %s108
      %s130 = sphi 0, %s132
      %s133 = sphi 0, %s130
      %s134 = sphi 0, %s133
      %s150 = sphi 0, %s134
      %s156 = sphi 0, %s158
      %s159 = sphi 0, %s156
      %s160 = sphi 0, %s159
      %s176 = sphi 0, %s160
      %s182 = sphi 0, %s184
      %s185 = sphi 0, %s182
      %s186 = sphi 0, %s185
      %s202 = sphi 0, %s186
    $region4: #{tpu_custom_call.1} parent=1 // loop_header_branch
      %29 = sbr.rel (%p27) target = $region8
    $region5: #{tpu_custom_call.1} parent=1 // loop_body
      %s31 = ssub.s32 %s26, 1
      %s32 = ssub.s32 %s26, 2
      %s33 = sadd.s32 %s26, 1
      %s34 = ssub.s32 %s26, %s33
      %p35 = scmp.eq.s32.totalorder %s34, 0
      %s37 = sadd.s32 %s36, 1
      %s38 = scalar_select %p35, %s36, %s37
      %p41 = pneg %p35
      %p42 = scmp.eq.s32.totalorder %s26, 2
      %p43 = por %p41, %p42
      %p44 = scmp.ne.s32.totalorder %s36, %s39
      %p45 = scmp.eq.s32.totalorder %s26, 0
      %p46 = por %p44, %p45
      %p47 = scmp.ne.s32.totalorder %s36, %s39
      %p48 = scmp.eq.s32.totalorder %s31, 2
      %p49 = por %p47, %p48
      %p50 = scmp.ne.s32.totalorder %s39, %s40
      %p51 = scmp.eq.s32.totalorder %s31, 0
      %p52 = por %p50, %p51
      %p53 = scmp.ne.s32.totalorder %s39, %s40
      %p54 = scmp.eq.s32.totalorder %s32, 2
      %p55 = por %p53, %p54
      %p57 = scmp.ne.s32.totalorder %s40, %s56
      %p58 = scmp.eq.s32.totalorder %s32, 0
      %p59 = por %p57, %p58
      %s61 = sadd.s32 %s60, 1
      %p64 = scmp.eq.s32.totalorder %s26, 2
      %p65 = scmp.ne.s32.totalorder %s60, %s62
      %p66 = scmp.eq.s32.totalorder %s26, 0
      %p67 = por %p65, %p66
      %p68 = scmp.ne.s32.totalorder %s60, %s62
      %p69 = scmp.eq.s32.totalorder %s31, 2
      %p70 = por %p68, %p69
      %p71 = scmp.ne.s32.totalorder %s62, %s63
      %p72 = scmp.eq.s32.totalorder %s31, 0
      %p73 = por %p71, %p72
      %p74 = scmp.ne.s32.totalorder %s62, %s63
      %p75 = scmp.eq.s32.totalorder %s32, 2
      %p76 = por %p74, %p75
      %p78 = scmp.ne.s32.totalorder %s63, %s77
      %p79 = scmp.eq.s32.totalorder %s32, 0
      %p80 = por %p78, %p79
      %s82 = sadd.s32 %s81, 1
      %p85 = scmp.eq.s32.totalorder %s26, 2
      %p86 = scmp.ne.s32.totalorder %s81, %s83
      %p87 = scmp.eq.s32.totalorder %s26, 0
      %p88 = por %p86, %p87
      %p89 = scmp.ne.s32.totalorder %s81, %s83
      %p90 = scmp.eq.s32.totalorder %s31, 2
      %p91 = por %p89, %p90
      %p92 = scmp.ne.s32.totalorder %s83, %s84
      %p93 = scmp.eq.s32.totalorder %s31, 0
      %p94 = por %p92, %p93
      %p95 = scmp.ne.s32.totalorder %s83, %s84
      %p96 = scmp.eq.s32.totalorder %s32, 2
      %p97 = por %p95, %p96
      %p99 = scmp.ne.s32.totalorder %s84, %s98
      %p100 = scmp.eq.s32.totalorder %s32, 0
      %p101 = por %p99, %p100
      %s102 = ssub.s32 %s26, %s33
      %p103 = scmp.eq.s32.totalorder %s102, 0
      %s105 = sadd.s32 %s104, 1
      %s106 = scalar_select %p103, %s104, %s105
      %p109 = pneg %p103
      %p110 = scmp.eq.s32.totalorder %s26, 2
      %p111 = por %p109, %p110
      %p112 = scmp.ne.s32.totalorder %s104, %s107
      %p113 = scmp.eq.s32.totalorder %s26, 0
      %p114 = por %p112, %p113
      %p115 = scmp.ne.s32.totalorder %s104, %s107
      %p116 = scmp.eq.s32.totalorder %s31, 2
      %p117 = por %p115, %p116
      %p118 = scmp.ne.s32.totalorder %s107, %s108
      %p119 = scmp.eq.s32.totalorder %s31, 0
      %p120 = por %p118, %p119
      %p121 = scmp.ne.s32.totalorder %s107, %s108
      %p122 = scmp.eq.s32.totalorder %s32, 2
      %p123 = por %p121, %p122
      %p125 = scmp.ne.s32.totalorder %s108, %s124
      %p126 = scmp.eq.s32.totalorder %s32, 0
      %p127 = por %p125, %p126
      %s128 = ssub.s32 %s26, %s33
      %p129 = scmp.eq.s32.totalorder %s128, 0
      %s131 = sadd.s32 %s130, 1
      %s132 = scalar_select %p129, %s130, %s131
      %p135 = pneg %p129
      %p136 = scmp.eq.s32.totalorder %s26, 2
      %p137 = por %p135, %p136
      %p138 = scmp.ne.s32.totalorder %s130, %s133
      %p139 = scmp.eq.s32.totalorder %s26, 0
      %p140 = por %p138, %p139
      %p141 = scmp.ne.s32.totalorder %s130, %s133
      %p142 = scmp.eq.s32.totalorder %s31, 2
      %p143 = por %p141, %p142
      %p144 = scmp.ne.s32.totalorder %s133, %s134
      %p145 = scmp.eq.s32.totalorder %s31, 0
      %p146 = por %p144, %p145
      %p147 = scmp.ne.s32.totalorder %s133, %s134
      %p148 = scmp.eq.s32.totalorder %s32, 2
      %p149 = por %p147, %p148
      %p151 = scmp.ne.s32.totalorder %s134, %s150
      %p152 = scmp.eq.s32.totalorder %s32, 0
      %p153 = por %p151, %p152
      %s154 = ssub.s32 %s26, %s33
      %p155 = scmp.eq.s32.totalorder %s154, 0
      %s157 = sadd.s32 %s156, 1
      %s158 = scalar_select %p155, %s156, %s157
      %p161 = pneg %p155
      %p162 = scmp.eq.s32.totalorder %s26, 2
      %p163 = por %p161, %p162
      %p164 = scmp.ne.s32.totalorder %s156, %s159
      %p165 = scmp.eq.s32.totalorder %s26, 0
      %p166 = por %p164, %p165
      %p167 = scmp.ne.s32.totalorder %s156, %s159
      %p168 = scmp.eq.s32.totalorder %s31, 2
      %p169 = por %p167, %p168
      %p170 = scmp.ne.s32.totalorder %s159, %s160
      %p171 = scmp.eq.s32.totalorder %s31, 0
      %p172 = por %p170, %p171
      %p173 = scmp.ne.s32.totalorder %s159, %s160
      %p174 = scmp.eq.s32.totalorder %s32, 2
      %p175 = por %p173, %p174
      %p177 = scmp.ne.s32.totalorder %s160, %s176
      %p178 = scmp.eq.s32.totalorder %s32, 0
      %p179 = por %p177, %p178
      %s180 = ssub.s32 %s26, %s33
      %p181 = scmp.eq.s32.totalorder %s180, 0
      %s183 = sadd.s32 %s182, 1
      %s184 = scalar_select %p181, %s182, %s183
      %p187 = pneg %p181
      %p188 = scmp.eq.s32.totalorder %s26, 2
      %p189 = por %p187, %p188
      %p190 = scmp.ne.s32.totalorder %s182, %s185
      %p191 = scmp.eq.s32.totalorder %s26, 0
      %p192 = por %p190, %p191
      %p193 = scmp.ne.s32.totalorder %s182, %s185
      %p194 = scmp.eq.s32.totalorder %s31, 2
      %p195 = por %p193, %p194
      %p196 = scmp.ne.s32.totalorder %s185, %s186
      %p197 = scmp.eq.s32.totalorder %s31, 0
      %p198 = por %p196, %p197
      %p199 = scmp.ne.s32.totalorder %s185, %s186
      %p200 = scmp.eq.s32.totalorder %s32, 2
      %p201 = por %p199, %p200
      %p203 = scmp.ne.s32.totalorder %s186, %s202
      %p204 = scmp.eq.s32.totalorder %s32, 0
      %p205 = por %p203, %p204
      %p206 = scmp.le.s32.totalorder 1, %s26
      %p207 = scmp.lt.s32.totalorder %s26, 4
      %p208 = pnand %p206, %p207
      %p209 = pneg %p208
      // Predicated region
      $region9: #{tpu_custom_call.1} parent=5 // pred_check
        _
      $region10: #{tpu_custom_call.1} parent=5 // pred_check_branch
        %211 = sbr.rel (%p208) target = $region12
      $region11: #{tpu_custom_call.1} parent=5 // pred_region
        %s212 = ssub.s32 %s26, 1
        // Predicated region
        $region13: #{tpu_custom_call.1} parent=11 // pred_check
          %p213 = pneg %p73
        $region14: #{tpu_custom_call.1} parent=11 // pred_check_branch
          %215 = sbr.rel (%p213) target = $region16
        $region15: #{tpu_custom_call.1} parent=11 // pred_region
          %s217 = ssub.s32 8192, 8192
          %218 = vsyncadd [#allocation6], %s217
          %s219 = sshll.u32 [#allocation5], 4
          %s220 = int_to_ptr.vmem [resolvable:$true] %s219
          %225 = dma.hbm_to_vmem [thread:$0]  %s1, 8192, %s220, [#allocation6], 512, 512, 32
        $region16: #{tpu_custom_call.1} parent=11 // pred_fallthru
          _
        // Predicated region
        $region17: #{tpu_custom_call.1} parent=11 // pred_check
          %p226 = pneg %p94
        $region18: #{tpu_custom_call.1} parent=11 // pred_check_branch
          %228 = sbr.rel (%p226) target = $region20
        $region19: #{tpu_custom_call.1} parent=11 // pred_region
          %s230 = ssub.s32 128, 128
          %231 = vsyncadd [#allocation6], %s230
          %s233 = sshll.u32 [#allocation7], 4
          %s234 = int_to_ptr.vmem [resolvable:$true] %s233
          %236 = dma.hbm_to_vmem [thread:$0]  %s2, 128, %s234, [#allocation6]
        $region20: #{tpu_custom_call.1} parent=11 // pred_fallthru
          _
      $region12: #{tpu_custom_call.1} parent=5 // pred_fallthru
        _
      %p237 = scmp.lt.s32.totalorder %s26, 3
      // Predicated region
      $region21: #{tpu_custom_call.1} parent=5 // pred_check
        %p238 = pneg %p237
      $region22: #{tpu_custom_call.1} parent=5 // pred_check_branch
        %240 = sbr.rel (%p238) target = $region24
      $region23: #{tpu_custom_call.1} parent=5 // pred_region
        // Predicated region
        $region25: #{tpu_custom_call.1} parent=23 // pred_check
          %p241 = pneg %p46
        $region26: #{tpu_custom_call.1} parent=23 // pred_check_branch
          %243 = sbr.rel (%p241) target = $region28
        $region27: #{tpu_custom_call.1} parent=23 // pred_region
          %s244 = sand.u32 %s36, 1
          %s245 = scalar_lea.sflag [#allocation3], %s244
          %s246 = sand.u32 %s36, 1
          %s247 = smul.addr %s246, 4
          %s248 = scalar_lea.vmem [#allocation2], %s247
          %s250 = ssub.s32 64, 64
          %251 = vsyncadd %s245, %s250
          %s252 = smul.addr %s26, 64
          %s253 = scalar_lea.hbm %s0, %s252
          %s255 = sshll.u32 %s248, 4
          %s256 = int_to_ptr.vmem [resolvable:$true] %s255
          %258 = dma.hbm_to_vmem [thread:$0]  %s253, 64, %s256, %s245
        $region28: #{tpu_custom_call.1} parent=23 // pred_fallthru
          _
      $region24: #{tpu_custom_call.1} parent=5 // pred_fallthru
        _
      %p259 = scmp.le.s32.totalorder 1, %s26
      %p260 = scmp.lt.s32.totalorder %s26, 4
      %p261 = pnand %p259, %p260
      %p262 = pneg %p261
      // Predicated region
      $region29: #{tpu_custom_call.1} parent=5 // pred_check
        _
      $region30: #{tpu_custom_call.1} parent=5 // pred_check_branch
        %264 = sbr.rel (%p261) target = $region32
      $region31: #{tpu_custom_call.1} parent=5 // pred_region
        %s265 = ssub.s32 %s26, 1
        %s266 = sand.u32 %s39, 1
        %s267 = scalar_lea.sflag [#allocation3], %s266
        %s268 = sand.u32 %s39, 1
        %s269 = smul.addr %s268, 4
        %s270 = scalar_lea.vmem [#allocation2], %s269
        // Predicated region
        $region33: #{tpu_custom_call.1} parent=31 // pred_check
          %p271 = pneg %p52
        $region34: #{tpu_custom_call.1} parent=31 // pred_check_branch
          %273 = sbr.rel (%p271) target = $region36
        $region35: #{tpu_custom_call.1} parent=31 // pred_region
          %274 = dma.done %s267, 64
        $region36: #{tpu_custom_call.1} parent=31 // pred_fallthru
          _
        // Predicated region
        $region37: #{tpu_custom_call.1} parent=31 // pred_check
          %p275 = pneg %p73
        $region38: #{tpu_custom_call.1} parent=31 // pred_check_branch
          %277 = sbr.rel (%p275) target = $region40
        $region39: #{tpu_custom_call.1} parent=31 // pred_region
          %278 = dma.done [#allocation6], 8192
        $region40: #{tpu_custom_call.1} parent=31 // pred_fallthru
          _
        // Predicated region
        $region41: #{tpu_custom_call.1} parent=31 // pred_check
          %p279 = pneg %p94
        $region42: #{tpu_custom_call.1} parent=31 // pred_check_branch
          %281 = sbr.rel (%p279) target = $region44
        $region43: #{tpu_custom_call.1} parent=31 // pred_region
          %282 = dma.done [#allocation6], 128
        $region44: #{tpu_custom_call.1} parent=31 // pred_fallthru
          _
        %s283 = sand.u32 %s39, 1
        %s284 = scalar_lea.sflag [#allocation3], %s283
        %s285 = sand.u32 %s39, 1
        %s286 = smul.addr %s285, 4
        %s287 = scalar_lea.vmem [#allocation2], %s286
        %p288 = pneg %p52
        %p289 = pneg %p49
        %p290 = pneg %p73
        %p291 = pneg %p70
        %p292 = pneg %p94
        %p293 = pneg %p91
        %p294 = pneg %p120
        %p295 = pneg %p117
        %s296 = sand.u32 %s107, 1
        %s297 = scalar_lea.sflag [#allocation4], %s296
        %s298 = sand.u32 %s107, 1
        %s299 = smul.addr %s298, 8
        %s300 = scalar_lea.vmem [#allocation8], %s299
        %p301 = pneg %p146
        %p302 = pneg %p143
        %s303 = sand.u32 %s31, 1
        %s304 = scalar_lea.sflag [#allocation10], %s303
        %s305 = sand.u32 %s133, 1
        %s306 = smul.addr %s305, 8
        %s307 = scalar_lea.vmem [#allocation9], %s306
        %p308 = pneg %p172
        %p309 = pneg %p169
        %s310 = sand.u32 %s31, 1
        %s311 = scalar_lea.sflag [#allocation10], %s310
        %s312 = sand.u32 %s159, 1
        %s313 = smul.addr %s312, 8
        %s314 = scalar_lea.vmem [#allocation11], %s313
        %p315 = pneg %p198
        %p316 = pneg %p195
        %s317 = sand.u32 %s185, 1
        %s318 = scalar_lea.sflag [#allocation13], %s317
        %s319 = sand.u32 %s185, 1
        %s320 = smul.addr %s319, 16
        %s321 = scalar_lea.vmem [#allocation12], %s320
        %v323 = vld [vmem:[%s270] sm:$0xf]
        %v324 = vld [vmem:[#allocation5] sm:$0xff]
        %v325 = vld [vmem:[#allocation5 + $0x8] sm:$0xff]
        %v326 = vld [vmem:[#allocation5 + $0x10] sm:$0xff]
        %v327 = vld [vmem:[#allocation5 + $0x18] sm:$0xff]
        %v328 = vld [vmem:[#allocation5 + $0x20] sm:$0xff]
        %v329 = vld [vmem:[#allocation5 + $0x28] sm:$0xff]
        %v330 = vld [vmem:[#allocation5 + $0x30] sm:$0xff]
        %v331 = vld [vmem:[#allocation5 + $0x38] sm:$0xff]
        %v332 = vld [vmem:[#allocation5 + $0x40] sm:$0xff]
        %v333 = vld [vmem:[#allocation5 + $0x48] sm:$0xff]
        %v334 = vld [vmem:[#allocation5 + $0x50] sm:$0xff]
        %v335 = vld [vmem:[#allocation5 + $0x58] sm:$0xff]
        %v336 = vld [vmem:[#allocation5 + $0x60] sm:$0xff]
        %v337 = vld [vmem:[#allocation5 + $0x68] sm:$0xff]
        %v338 = vld [vmem:[#allocation5 + $0x70] sm:$0xff]
        %v339 = vld [vmem:[#allocation5 + $0x78] sm:$0xff]
        %v340 = vld [vmem:[#allocation5 + $0x80] sm:$0xff]
        %v341 = vld [vmem:[#allocation5 + $0x88] sm:$0xff]
        %v342 = vld [vmem:[#allocation5 + $0x90] sm:$0xff]
        %v343 = vld [vmem:[#allocation5 + $0x98] sm:$0xff]
        %v344 = vld [vmem:[#allocation5 + $0xa0] sm:$0xff]
        %v345 = vld [vmem:[#allocation5 + $0xa8] sm:$0xff]
        %v346 = vld [vmem:[#allocation5 + $0xb0] sm:$0xff]
        %v347 = vld [vmem:[#allocation5 + $0xb8] sm:$0xff]
        %v348 = vld [vmem:[#allocation5 + $0xc0] sm:$0xff]
        %v349 = vld [vmem:[#allocation5 + $0xc8] sm:$0xff]
        %v350 = vld [vmem:[#allocation5 + $0xd0] sm:$0xff]
        %v351 = vld [vmem:[#allocation5 + $0xd8] sm:$0xff]
        %v352 = vld [vmem:[#allocation5 + $0xe0] sm:$0xff]
        %v353 = vld [vmem:[#allocation5 + $0xe8] sm:$0xff]
        %v354 = vld [vmem:[#allocation5 + $0xf0] sm:$0xff]
        %v355 = vld [vmem:[#allocation5 + $0xf8] sm:$0xff]
        %v356 = vld [vmem:[#allocation5 + $0x100] sm:$0xff]
        %v357 = vld [vmem:[#allocation5 + $0x108] sm:$0xff]
        %v358 = vld [vmem:[#allocation5 + $0x110] sm:$0xff]
        %v359 = vld [vmem:[#allocation5 + $0x118] sm:$0xff]
        %v360 = vld [vmem:[#allocation5 + $0x120] sm:$0xff]
        %v361 = vld [vmem:[#allocation5 + $0x128] sm:$0xff]
        %v362 = vld [vmem:[#allocation5 + $0x130] sm:$0xff]
        %v363 = vld [vmem:[#allocation5 + $0x138] sm:$0xff]
        %v364 = vld [vmem:[#allocation5 + $0x140] sm:$0xff]
        %v365 = vld [vmem:[#allocation5 + $0x148] sm:$0xff]
        %v366 = vld [vmem:[#allocation5 + $0x150] sm:$0xff]
        %v367 = vld [vmem:[#allocation5 + $0x158] sm:$0xff]
        %v368 = vld [vmem:[#allocation5 + $0x160] sm:$0xff]
        %v369 = vld [vmem:[#allocation5 + $0x168] sm:$0xff]
        %v370 = vld [vmem:[#allocation5 + $0x170] sm:$0xff]
        %v371 = vld [vmem:[#allocation5 + $0x178] sm:$0xff]
        %v372 = vld [vmem:[#allocation5 + $0x180] sm:$0xff]
        %v373 = vld [vmem:[#allocation5 + $0x188] sm:$0xff]
        %v374 = vld [vmem:[#allocation5 + $0x190] sm:$0xff]
        %v375 = vld [vmem:[#allocation5 + $0x198] sm:$0xff]
        %v376 = vld [vmem:[#allocation5 + $0x1a0] sm:$0xff]
        %v377 = vld [vmem:[#allocation5 + $0x1a8] sm:$0xff]
        %v378 = vld [vmem:[#allocation5 + $0x1b0] sm:$0xff]
        %v379 = vld [vmem:[#allocation5 + $0x1b8] sm:$0xff]
        %v380 = vld [vmem:[#allocation5 + $0x1c0] sm:$0xff]
        %v381 = vld [vmem:[#allocation5 + $0x1c8] sm:$0xff]
        %v382 = vld [vmem:[#allocation5 + $0x1d0] sm:$0xff]
        %v383 = vld [vmem:[#allocation5 + $0x1d8] sm:$0xff]
        %v384 = vld [vmem:[#allocation5 + $0x1e0] sm:$0xff]
        %v385 = vld [vmem:[#allocation5 + $0x1e8] sm:$0xff]
        %v386 = vld [vmem:[#allocation5 + $0x1f0] sm:$0xff]
        %v387 = vld [vmem:[#allocation5 + $0x1f8] sm:$0xff]
        %v388 = vld [vmem:[#allocation7] sm:$0xff]
        %v390 = vlaneseq
        %v391 = vshrl.u32 %v390, 7
        %v392 = vsub.s32 0, %v391
        %v393 = vrot.slane %v388, %v392
        %v394 = vlaneseq
        %v395 = vshrl.u32 %v394, 7
        %v396 = vsub.s32 1, %v395
        %v397 = vrot.slane %v388, %v396
        %v398 = vlaneseq
        %v399 = vshrl.u32 %v398, 7
        %v400 = vsub.s32 2, %v399
        %v401 = vrot.slane %v388, %v400
        %v402 = vlaneseq
        %v403 = vshrl.u32 %v402, 7
        %v404 = vsub.s32 3, %v403
        %v405 = vrot.slane %v388, %v404
        %v406 = vlaneseq
        %v407 = vshrl.u32 %v406, 7
        %v408 = vsub.s32 4, %v407
        %v409 = vrot.slane %v388, %v408
        %v410 = vlaneseq
        %v411 = vshrl.u32 %v410, 7
        %v412 = vsub.s32 5, %v411
        %v413 = vrot.slane %v388, %v412
        %v414 = vlaneseq
        %v415 = vshrl.u32 %v414, 7
        %v416 = vsub.s32 6, %v415
        %v417 = vrot.slane %v388, %v416
        %v418 = vlaneseq
        %v419 = vshrl.u32 %v418, 7
        %v420 = vsub.s32 7, %v419
        %v421 = vrot.slane %v388, %v420
        %v494 = vunpack.c.l.b16 %v324
        %v495 = vunpack.c.h.b16 %v324
        %v496 = vunpack.c.l.b16 %v325
        %v497 = vunpack.c.h.b16 %v325
        %v498 = vunpack.c.l.b16 %v326
        %v499 = vunpack.c.h.b16 %v326
        %v500 = vunpack.c.l.b16 %v327
        %v501 = vunpack.c.h.b16 %v327
        %v502 = vunpack.c.l.b16 %v328
        %v503 = vunpack.c.h.b16 %v328
        %v504 = vunpack.c.l.b16 %v329
        %v505 = vunpack.c.h.b16 %v329
        %v506 = vunpack.c.l.b16 %v330
        %v507 = vunpack.c.h.b16 %v330
        %v508 = vunpack.c.l.b16 %v331
        %v509 = vunpack.c.h.b16 %v331
        %v510 = vunpack.c.l.b16 %v332
        %v511 = vunpack.c.h.b16 %v332
        %v512 = vunpack.c.l.b16 %v333
        %v513 = vunpack.c.h.b16 %v333
        %v514 = vunpack.c.l.b16 %v334
        %v515 = vunpack.c.h.b16 %v334
        %v516 = vunpack.c.l.b16 %v335
        %v517 = vunpack.c.h.b16 %v335
        %v518 = vunpack.c.l.b16 %v336
        %v519 = vunpack.c.h.b16 %v336
        %v520 = vunpack.c.l.b16 %v337
        %v521 = vunpack.c.h.b16 %v337
        %v522 = vunpack.c.l.b16 %v338
        %v523 = vunpack.c.h.b16 %v338
        %v524 = vunpack.c.l.b16 %v339
        %v525 = vunpack.c.h.b16 %v339
        %v526 = vunpack.c.l.b16 %v340
        %v527 = vunpack.c.h.b16 %v340
        %v528 = vunpack.c.l.b16 %v341
        %v529 = vunpack.c.h.b16 %v341
        %v530 = vunpack.c.l.b16 %v342
        %v531 = vunpack.c.h.b16 %v342
        %v532 = vunpack.c.l.b16 %v343
        %v533 = vunpack.c.h.b16 %v343
        %v534 = vunpack.c.l.b16 %v344
        %v535 = vunpack.c.h.b16 %v344
        %v536 = vunpack.c.l.b16 %v345
        %v537 = vunpack.c.h.b16 %v345
        %v538 = vunpack.c.l.b16 %v346
        %v539 = vunpack.c.h.b16 %v346
        %v540 = vunpack.c.l.b16 %v347
        %v541 = vunpack.c.h.b16 %v347
        %v542 = vunpack.c.l.b16 %v348
        %v543 = vunpack.c.h.b16 %v348
        %v544 = vunpack.c.l.b16 %v349
        %v545 = vunpack.c.h.b16 %v349
        %v546 = vunpack.c.l.b16 %v350
        %v547 = vunpack.c.h.b16 %v350
        %v548 = vunpack.c.l.b16 %v351
        %v549 = vunpack.c.h.b16 %v351
        %v550 = vunpack.c.l.b16 %v352
        %v551 = vunpack.c.h.b16 %v352
        %v552 = vunpack.c.l.b16 %v353
        %v553 = vunpack.c.h.b16 %v353
        %v554 = vunpack.c.l.b16 %v354
        %v555 = vunpack.c.h.b16 %v354
        %v556 = vunpack.c.l.b16 %v355
        %v557 = vunpack.c.h.b16 %v355
        %v558 = vunpack.c.l.b16 %v356
        %v559 = vunpack.c.h.b16 %v356
        %v560 = vunpack.c.l.b16 %v357
        %v561 = vunpack.c.h.b16 %v357
        %v562 = vunpack.c.l.b16 %v358
        %v563 = vunpack.c.h.b16 %v358
        %v564 = vunpack.c.l.b16 %v359
        %v565 = vunpack.c.h.b16 %v359
        %v566 = vunpack.c.l.b16 %v360
        %v567 = vunpack.c.h.b16 %v360
        %v568 = vunpack.c.l.b16 %v361
        %v569 = vunpack.c.h.b16 %v361
        %v570 = vunpack.c.l.b16 %v362
        %v571 = vunpack.c.h.b16 %v362
        %v572 = vunpack.c.l.b16 %v363
        %v573 = vunpack.c.h.b16 %v363
        %v574 = vunpack.c.l.b16 %v364
        %v575 = vunpack.c.h.b16 %v364
        %v576 = vunpack.c.l.b16 %v365
        %v577 = vunpack.c.h.b16 %v365
        %v578 = vunpack.c.l.b16 %v366
        %v579 = vunpack.c.h.b16 %v366
        %v580 = vunpack.c.l.b16 %v367
        %v581 = vunpack.c.h.b16 %v367
        %v582 = vunpack.c.l.b16 %v368
        %v583 = vunpack.c.h.b16 %v368
        %v584 = vunpack.c.l.b16 %v369
        %v585 = vunpack.c.h.b16 %v369
        %v586 = vunpack.c.l.b16 %v370
        %v587 = vunpack.c.h.b16 %v370
        %v588 = vunpack.c.l.b16 %v371
        %v589 = vunpack.c.h.b16 %v371
        %v590 = vunpack.c.l.b16 %v372
        %v591 = vunpack.c.h.b16 %v372
        %v592 = vunpack.c.l.b16 %v373
        %v593 = vunpack.c.h.b16 %v373
        %v594 = vunpack.c.l.b16 %v374
        %v595 = vunpack.c.h.b16 %v374
        %v596 = vunpack.c.l.b16 %v375
        %v597 = vunpack.c.h.b16 %v375
        %v598 = vunpack.c.l.b16 %v376
        %v599 = vunpack.c.h.b16 %v376
        %v600 = vunpack.c.l.b16 %v377
        %v601 = vunpack.c.h.b16 %v377
        %v602 = vunpack.c.l.b16 %v378
        %v603 = vunpack.c.h.b16 %v378
        %v604 = vunpack.c.l.b16 %v379
        %v605 = vunpack.c.h.b16 %v379
        %v606 = vunpack.c.l.b16 %v380
        %v607 = vunpack.c.h.b16 %v380
        %v608 = vunpack.c.l.b16 %v381
        %v609 = vunpack.c.h.b16 %v381
        %v610 = vunpack.c.l.b16 %v382
        %v611 = vunpack.c.h.b16 %v382
        %v612 = vunpack.c.l.b16 %v383
        %v613 = vunpack.c.h.b16 %v383
        %v614 = vunpack.c.l.b16 %v384
        %v615 = vunpack.c.h.b16 %v384
        %v616 = vunpack.c.l.b16 %v385
        %v617 = vunpack.c.h.b16 %v385
        %v618 = vunpack.c.l.b16 %v386
        %v619 = vunpack.c.h.b16 %v386
        %v620 = vunpack.c.l.b16 %v387
        %v621 = vunpack.c.h.b16 %v387
        %v622 = vpack.c.b16 %v502, %v494
        %v623 = vpack.c.b16 %v503, %v495
        %v624 = vpack.c.b16 %v504, %v496
        %v625 = vpack.c.b16 %v505, %v497
        %v626 = vpack.c.b16 %v506, %v498
        %v627 = vpack.c.b16 %v507, %v499
        %v628 = vpack.c.b16 %v508, %v500
        %v629 = vpack.c.b16 %v509, %v501
        %v630 = vpack.c.b16 %v518, %v510
        %v631 = vpack.c.b16 %v519, %v511
        %v632 = vpack.c.b16 %v520, %v512
        %v633 = vpack.c.b16 %v521, %v513
        %v634 = vpack.c.b16 %v522, %v514
        %v635 = vpack.c.b16 %v523, %v515
        %v636 = vpack.c.b16 %v524, %v516
        %v637 = vpack.c.b16 %v525, %v517
        %v638 = vpack.c.b16 %v534, %v526
        %v639 = vpack.c.b16 %v535, %v527
        %v640 = vpack.c.b16 %v536, %v528
        %v641 = vpack.c.b16 %v537, %v529
        %v642 = vpack.c.b16 %v538, %v530
        %v643 = vpack.c.b16 %v539, %v531
        %v644 = vpack.c.b16 %v540, %v532
        %v645 = vpack.c.b16 %v541, %v533
        %v646 = vpack.c.b16 %v550, %v542
        %v647 = vpack.c.b16 %v551, %v543
        %v648 = vpack.c.b16 %v552, %v544
        %v649 = vpack.c.b16 %v553, %v545
        %v650 = vpack.c.b16 %v554, %v546
        %v651 = vpack.c.b16 %v555, %v547
        %v652 = vpack.c.b16 %v556, %v548
        %v653 = vpack.c.b16 %v557, %v549
        %v654 = vpack.c.b16 %v566, %v558
        %v655 = vpack.c.b16 %v567, %v559
        %v656 = vpack.c.b16 %v568, %v560
        %v657 = vpack.c.b16 %v569, %v561
        %v658 = vpack.c.b16 %v570, %v562
        %v659 = vpack.c.b16 %v571, %v563
        %v660 = vpack.c.b16 %v572, %v564
        %v661 = vpack.c.b16 %v573, %v565
        %v662 = vpack.c.b16 %v582, %v574
        %v663 = vpack.c.b16 %v583, %v575
        %v664 = vpack.c.b16 %v584, %v576
        %v665 = vpack.c.b16 %v585, %v577
        %v666 = vpack.c.b16 %v586, %v578
        %v667 = vpack.c.b16 %v587, %v579
        %v668 = vpack.c.b16 %v588, %v580
        %v669 = vpack.c.b16 %v589, %v581
        %v670 = vpack.c.b16 %v598, %v590
        %v671 = vpack.c.b16 %v599, %v591
        %v672 = vpack.c.b16 %v600, %v592
        %v673 = vpack.c.b16 %v601, %v593
        %v674 = vpack.c.b16 %v602, %v594
        %v675 = vpack.c.b16 %v603, %v595
        %v676 = vpack.c.b16 %v604, %v596
        %v677 = vpack.c.b16 %v605, %v597
        %v678 = vpack.c.b16 %v614, %v606
        %v679 = vpack.c.b16 %v615, %v607
        %v680 = vpack.c.b16 %v616, %v608
        %v681 = vpack.c.b16 %v617, %v609
        %v682 = vpack.c.b16 %v618, %v610
        %v683 = vpack.c.b16 %v619, %v611
        %v684 = vpack.c.b16 %v620, %v612
        %v685 = vpack.c.b16 %v621, %v613
        %750 = vmatprep.subr.bf16.mxu0 %v623
        %751 = vmatpush1.bf16.msra.mxu0 %v622
        %752 = vmatprep.subr.bf16.mxu0 %v631
        %753 = vmatpush1.bf16.msra.mxu0 %v630
        %754 = vmatprep.subr.bf16.mxu0 %v639
        %755 = vmatpush1.bf16.msra.mxu0 %v638
        %756 = vmatprep.subr.bf16.mxu0 %v647
        %757 = vmatpush1.bf16.msra.mxu0 %v646
        %758 = vmatprep.subr.bf16.mxu0 %v655
        %759 = vmatpush1.bf16.msra.mxu0 %v654
        %760 = vmatprep.subr.bf16.mxu0 %v663
        %761 = vmatpush1.bf16.msra.mxu0 %v662
        %762 = vmatprep.subr.bf16.mxu0 %v671
        %763 = vmatpush1.bf16.msra.mxu0 %v670
        %764 = vmatprep.subr.bf16.mxu0 %v679
        %765 = vmatpush1.bf16.msra.mxu0 %v678
        %766 = vmatprep.subr.bf16.mxu0 0
        %767 = vmatpush1.bf16.msra.mxu0 0
        %768 = vmatprep.subr.bf16.mxu0 0
        %769 = vmatpush1.bf16.msra.mxu0 0
        %770 = vmatprep.subr.bf16.mxu0 0
        %771 = vmatpush1.bf16.msra.mxu0 0
        %772 = vmatprep.subr.bf16.mxu0 0
        %773 = vmatpush1.bf16.msra.mxu0 0
        %774 = vmatprep.subr.bf16.mxu0 0
        %775 = vmatpush1.bf16.msra.mxu0 0
        %776 = vmatprep.subr.bf16.mxu0 0
        %777 = vmatpush1.bf16.msra.mxu0 0
        %778 = vmatprep.subr.bf16.mxu0 0
        %779 = vmatpush1.bf16.msra.mxu0 0
        %780 = vmatprep.subr.bf16.mxu0 0
        %781 = vmatpush1.bf16.msra.mxu0 0
        %782 = vmatprep.mubr.bf16.mxu0 0
        %783 = vmatmul.mubr.bf16.gmra.mrb[0].mxu0 %v323
        %v784 = vpop.f32.mrb[0].mxu0
        %v785 = vadd.f32 %v393, %v784
        %v786 = vpop.f32.mrb[0].mxu0
        %v787 = vadd.f32 %v397, %v786
        %v788 = vpop.f32.mrb[0].mxu0
        %v789 = vpop.f32.mrb[0].mxu0
        %790 = vdwg.mxu0
        %791 = vmatprep.subr.bf16.mxu0 %v625
        %792 = vmatpush1.bf16.msra.mxu0 %v624
        %793 = vmatprep.subr.bf16.mxu0 %v633
        %794 = vmatpush1.bf16.msra.mxu0 %v632
        %795 = vmatprep.subr.bf16.mxu0 %v641
        %796 = vmatpush1.bf16.msra.mxu0 %v640
        %797 = vmatprep.subr.bf16.mxu0 %v649
        %798 = vmatpush1.bf16.msra.mxu0 %v648
        %799 = vmatprep.subr.bf16.mxu0 %v657
        %800 = vmatpush1.bf16.msra.mxu0 %v656
        %801 = vmatprep.subr.bf16.mxu0 %v665
        %802 = vmatpush1.bf16.msra.mxu0 %v664
        %803 = vmatprep.subr.bf16.mxu0 %v673
        %804 = vmatpush1.bf16.msra.mxu0 %v672
        %805 = vmatprep.subr.bf16.mxu0 %v681
        %806 = vmatpush1.bf16.msra.mxu0 %v680
        %807 = vmatprep.subr.bf16.mxu0 0
        %808 = vmatpush1.bf16.msra.mxu0 0
        %809 = vmatprep.subr.bf16.mxu0 0
        %810 = vmatpush1.bf16.msra.mxu0 0
        %811 = vmatprep.subr.bf16.mxu0 0
        %812 = vmatpush1.bf16.msra.mxu0 0
        %813 = vmatprep.subr.bf16.mxu0 0
        %814 = vmatpush1.bf16.msra.mxu0 0
        %815 = vmatprep.subr.bf16.mxu0 0
        %816 = vmatpush1.bf16.msra.mxu0 0
        %817 = vmatprep.subr.bf16.mxu0 0
        %818 = vmatpush1.bf16.msra.mxu0 0
        %819 = vmatprep.subr.bf16.mxu0 0
        %820 = vmatpush1.bf16.msra.mxu0 0
        %821 = vmatprep.subr.bf16.mxu0 0
        %822 = vmatpush1.bf16.msra.mxu0 0
        %823 = vmatprep.mubr.bf16.mxu0 0
        %824 = vmatmul.mubr.bf16.gmra.mrb[0].mxu0 %v323
        %v825 = vpop.f32.mrb[0].mxu0
        %v826 = vadd.f32 %v401, %v825
        %v827 = vpop.f32.mrb[0].mxu0
        %v828 = vadd.f32 %v405, %v827
        %v829 = vpop.f32.mrb[0].mxu0
        %v830 = vpop.f32.mrb[0].mxu0
        %831 = vdwg.mxu0
        %832 = vmatprep.subr.bf16.mxu0 %v627
        %833 = vmatpush1.bf16.msra.mxu0 %v626
        %834 = vmatprep.subr.bf16.mxu0 %v635
        %835 = vmatpush1.bf16.msra.mxu0 %v634
        %836 = vmatprep.subr.bf16.mxu0 %v643
        %837 = vmatpush1.bf16.msra.mxu0 %v642
        %838 = vmatprep.subr.bf16.mxu0 %v651
        %839 = vmatpush1.bf16.msra.mxu0 %v650
        %840 = vmatprep.subr.bf16.mxu0 %v659
        %841 = vmatpush1.bf16.msra.mxu0 %v658
        %842 = vmatprep.subr.bf16.mxu0 %v667
        %843 = vmatpush1.bf16.msra.mxu0 %v666
        %844 = vmatprep.subr.bf16.mxu0 %v675
        %845 = vmatpush1.bf16.msra.mxu0 %v674
        %846 = vmatprep.subr.bf16.mxu0 %v683
        %847 = vmatpush1.bf16.msra.mxu0 %v682
        %848 = vmatprep.subr.bf16.mxu0 0
        %849 = vmatpush1.bf16.msra.mxu0 0
        %850 = vmatprep.subr.bf16.mxu0 0
        %851 = vmatpush1.bf16.msra.mxu0 0
        %852 = vmatprep.subr.bf16.mxu0 0
        %853 = vmatpush1.bf16.msra.mxu0 0
        %854 = vmatprep.subr.bf16.mxu0 0
        %855 = vmatpush1.bf16.msra.mxu0 0
        %856 = vmatprep.subr.bf16.mxu0 0
        %857 = vmatpush1.bf16.msra.mxu0 0
        %858 = vmatprep.subr.bf16.mxu0 0
        %859 = vmatpush1.bf16.msra.mxu0 0
        %860 = vmatprep.subr.bf16.mxu0 0
        %861 = vmatpush1.bf16.msra.mxu0 0
        %862 = vmatprep.subr.bf16.mxu0 0
        %863 = vmatpush1.bf16.msra.mxu0 0
        %864 = vmatprep.mubr.bf16.mxu0 0
        %865 = vmatmul.mubr.bf16.gmra.mrb[0].mxu0 %v323
        %v866 = vpop.f32.mrb[0].mxu0
        %v867 = vadd.f32 %v409, %v866
        %v868 = vpop.f32.mrb[0].mxu0
        %v869 = vadd.f32 %v413, %v868
        %v870 = vpop.f32.mrb[0].mxu0
        %v871 = vpop.f32.mrb[0].mxu0
        %872 = vdwg.mxu0
        %873 = vmatprep.subr.bf16.mxu0 %v629
        %874 = vmatpush1.bf16.msra.mxu0 %v628
        %875 = vmatprep.subr.bf16.mxu0 %v637
        %876 = vmatpush1.bf16.msra.mxu0 %v636
        %877 = vmatprep.subr.bf16.mxu0 %v645
        %878 = vmatpush1.bf16.msra.mxu0 %v644
        %879 = vmatprep.subr.bf16.mxu0 %v653
        %880 = vmatpush1.bf16.msra.mxu0 %v652
        %881 = vmatprep.subr.bf16.mxu0 %v661
        %882 = vmatpush1.bf16.msra.mxu0 %v660
        %883 = vmatprep.subr.bf16.mxu0 %v669
        %884 = vmatpush1.bf16.msra.mxu0 %v668
        %885 = vmatprep.subr.bf16.mxu0 %v677
        %886 = vmatpush1.bf16.msra.mxu0 %v676
        %887 = vmatprep.subr.bf16.mxu0 %v685
        %888 = vmatpush1.bf16.msra.mxu0 %v684
        %889 = vmatprep.subr.bf16.mxu0 0
        %890 = vmatpush1.bf16.msra.mxu0 0
        %891 = vmatprep.subr.bf16.mxu0 0
        %892 = vmatpush1.bf16.msra.mxu0 0
        %893 = vmatprep.subr.bf16.mxu0 0
        %894 = vmatpush1.bf16.msra.mxu0 0
        %895 = vmatprep.subr.bf16.mxu0 0
        %896 = vmatpush1.bf16.msra.mxu0 0
        %897 = vmatprep.subr.bf16.mxu0 0
        %898 = vmatpush1.bf16.msra.mxu0 0
        %899 = vmatprep.subr.bf16.mxu0 0
        %900 = vmatpush1.bf16.msra.mxu0 0
        %901 = vmatprep.subr.bf16.mxu0 0
        %902 = vmatpush1.bf16.msra.mxu0 0
        %903 = vmatprep.subr.bf16.mxu0 0
        %904 = vmatpush1.bf16.msra.mxu0 0
        %905 = vmatprep.mubr.bf16.mxu0 0
        %906 = vmatmul.mubr.bf16.gmra.mrb[0].mxu0 %v323
        %v907 = vpop.f32.mrb[0].mxu0
        %v908 = vadd.f32 %v417, %v907
        %v909 = vpop.f32.mrb[0].mxu0
        %v910 = vadd.f32 %v421, %v909
        %v911 = vpop.f32.mrb[0].mxu0
        %v912 = vpop.f32.mrb[0].mxu0
        %913 = vdwg.mxu0
        %v914 = vpack.c.bf16 %v785, %v785
        %v915 = vpack.c.bf16 %v787, %v787
        %v918 = vunpack.c.l.b16 %v914
        %v919 = vunpack.c.l.b16 %v915
        %v920 = vpack.c.b16 %v919, %v918
        %922 = vst [vmem:[%s300] sm:$0xff] %v920
        %v923 = vpack.c.bf16 %v826, %v826
        %v924 = vpack.c.bf16 %v828, %v828
        %v927 = vunpack.c.l.b16 %v923
        %v928 = vunpack.c.l.b16 %v924
        %v929 = vpack.c.b16 %v928, %v927
        %931 = vst [vmem:[%s307] sm:$0xff] %v929
        %v932 = vpack.c.bf16 %v867, %v867
        %v933 = vpack.c.bf16 %v869, %v869
        %v936 = vunpack.c.l.b16 %v932
        %v937 = vunpack.c.l.b16 %v933
        %v938 = vpack.c.b16 %v937, %v936
        %940 = vst [vmem:[%s314] sm:$0xff] %v938
        %941 = vst [vmem:[%s321] sm:$0xff] %v908
        %942 = vst [vmem:[%s321 + $0x8] sm:$0xff] %v910
        %s943 = sand.u32 %s107, 1
        %s944 = scalar_lea.sflag [#allocation4], %s943
        %s945 = sand.u32 %s107, 1
        %s946 = smul.addr %s945, 8
        %s947 = scalar_lea.vmem [#allocation8], %s946
        %s948 = sand.u32 %s31, 1
        %s949 = scalar_lea.sflag [#allocation10], %s948
        %s950 = sand.u32 %s133, 1
        %s951 = smul.addr %s950, 8
        %s952 = scalar_lea.vmem [#allocation9], %s951
        %s953 = sand.u32 %s31, 1
        %s954 = scalar_lea.sflag [#allocation10], %s953
        %s955 = sand.u32 %s159, 1
        %s956 = smul.addr %s955, 8
        %s957 = scalar_lea.vmem [#allocation11], %s956
        %s958 = sand.u32 %s185, 1
        %s959 = scalar_lea.sflag [#allocation13], %s958
        %s960 = sand.u32 %s185, 1
        %s961 = smul.addr %s960, 16
        %s962 = scalar_lea.vmem [#allocation12], %s961
        // Predicated region
        $region45: #{tpu_custom_call.1} parent=31 // pred_check
          %p963 = pneg %p117
        $region46: #{tpu_custom_call.1} parent=31 // pred_check_branch
          %965 = sbr.rel (%p963) target = $region48
        $region47: #{tpu_custom_call.1} parent=31 // pred_region
          %s967 = ssub.s32 128, 128
          %968 = vsyncadd %s944, %s967
          %s969 = smul.addr %s31, 2
          %s970 = smul.addr %s969, 64
          %s971 = scalar_lea.hbm %s3, %s970
          %s973 = sshll.u32 %s947, 4
          %s974 = int_to_ptr.vmem [resolvable:$true] %s973
          %976 = dma.vmem_to_hbm [thread:$0]  %s974, 128, %s971, %s944
        $region48: #{tpu_custom_call.1} parent=31 // pred_fallthru
          _
        // Predicated region
        $region49: #{tpu_custom_call.1} parent=31 // pred_check
          %p977 = pneg %p143
        $region50: #{tpu_custom_call.1} parent=31 // pred_check_branch
          %979 = sbr.rel (%p977) target = $region52
        $region51: #{tpu_custom_call.1} parent=31 // pred_region
          %s981 = ssub.s32 128, 128
          %982 = vsyncadd %s949, %s981
          %s983 = smul.addr %s31, 2
          %s984 = smul.addr %s983, 64
          %s985 = scalar_lea.hbm %s4, %s984
          %s987 = sshll.u32 %s952, 4
          %s988 = int_to_ptr.vmem [resolvable:$true] %s987
          %990 = dma.vmem_to_hbm [thread:$0]  %s988, 128, %s985, %s949
        $region52: #{tpu_custom_call.1} parent=31 // pred_fallthru
          _
        // Predicated region
        $region53: #{tpu_custom_call.1} parent=31 // pred_check
          %p991 = pneg %p169
        $region54: #{tpu_custom_call.1} parent=31 // pred_check_branch
          %993 = sbr.rel (%p991) target = $region56
        $region55: #{tpu_custom_call.1} parent=31 // pred_region
          %s995 = ssub.s32 128, 128
          %996 = vsyncadd %s954, %s995
          %s997 = smul.addr %s31, 2
          %s998 = smul.addr %s997, 64
          %s999 = scalar_lea.hbm %s5, %s998
          %s1001 = sshll.u32 %s957, 4
          %s1002 = int_to_ptr.vmem [resolvable:$true] %s1001
          %1004 = dma.vmem_to_hbm [thread:$0]  %s1002, 128, %s999, %s954
        $region56: #{tpu_custom_call.1} parent=31 // pred_fallthru
          _
        // Predicated region
        $region57: #{tpu_custom_call.1} parent=31 // pred_check
          %p1005 = pneg %p195
        $region58: #{tpu_custom_call.1} parent=31 // pred_check_branch
          %1007 = sbr.rel (%p1005) target = $region60
        $region59: #{tpu_custom_call.1} parent=31 // pred_region
          %s1009 = ssub.s32 256, 256
          %1010 = vsyncadd %s959, %s1009
          %s1011 = smul.addr %s31, 2
          %s1012 = smul.addr %s1011, 128
          %s1013 = scalar_lea.hbm %s6, %s1012
          %s1015 = sshll.u32 %s962, 4
          %s1016 = int_to_ptr.vmem [resolvable:$true] %s1015
          %1018 = dma.vmem_to_hbm [thread:$0]  %s1016, 256, %s1013, %s959
        $region60: #{tpu_custom_call.1} parent=31 // pred_fallthru
          _
      $region32: #{tpu_custom_call.1} parent=5 // pred_fallthru
        _
      %p1019 = scmp.le.s32.totalorder 2, %s26
      // Predicated region
      $region61: #{tpu_custom_call.1} parent=5 // pred_check
        %p1020 = pneg %p1019
      $region62: #{tpu_custom_call.1} parent=5 // pred_check_branch
        %1022 = sbr.rel (%p1020) target = $region64
      $region63: #{tpu_custom_call.1} parent=5 // pred_region
        %s1023 = ssub.s32 %s26, 2
        // Predicated region
        $region65: #{tpu_custom_call.1} parent=63 // pred_check
          %p1024 = pneg %p123
        $region66: #{tpu_custom_call.1} parent=63 // pred_check_branch
          %1026 = sbr.rel (%p1024) target = $region68
        $region67: #{tpu_custom_call.1} parent=63 // pred_region
          %s1027 = sand.u32 %s108, 1
          %s1028 = scalar_lea.sflag [#allocation4], %s1027
          %s1029 = sand.u32 %s108, 1
          %s1030 = smul.addr %s1029, 8
          %s1031 = scalar_lea.vmem [#allocation8], %s1030
          %1032 = dma.done %s1028, 128
        $region68: #{tpu_custom_call.1} parent=63 // pred_fallthru
          _
        // Predicated region
        $region69: #{tpu_custom_call.1} parent=63 // pred_check
          %p1033 = pneg %p149
        $region70: #{tpu_custom_call.1} parent=63 // pred_check_branch
          %1035 = sbr.rel (%p1033) target = $region72
        $region71: #{tpu_custom_call.1} parent=63 // pred_region
          %s1036 = sand.u32 %s32, 1
          %s1037 = scalar_lea.sflag [#allocation10], %s1036
          %s1038 = sand.u32 %s134, 1
          %s1039 = smul.addr %s1038, 8
          %s1040 = scalar_lea.vmem [#allocation9], %s1039
          %1041 = dma.done %s1037, 128
        $region72: #{tpu_custom_call.1} parent=63 // pred_fallthru
          _
        // Predicated region
        $region73: #{tpu_custom_call.1} parent=63 // pred_check
          %p1042 = pneg %p175
        $region74: #{tpu_custom_call.1} parent=63 // pred_check_branch
          %1044 = sbr.rel (%p1042) target = $region76
        $region75: #{tpu_custom_call.1} parent=63 // pred_region
          %s1045 = sand.u32 %s32, 1
          %s1046 = scalar_lea.sflag [#allocation10], %s1045
          %s1047 = sand.u32 %s160, 1
          %s1048 = smul.addr %s1047, 8
          %s1049 = scalar_lea.vmem [#allocation11], %s1048
          %1050 = dma.done %s1046, 128
        $region76: #{tpu_custom_call.1} parent=63 // pred_fallthru
          _
        // Predicated region
        $region77: #{tpu_custom_call.1} parent=63 // pred_check
          %p1051 = pneg %p201
        $region78: #{tpu_custom_call.1} parent=63 // pred_check_branch
          %1053 = sbr.rel (%p1051) target = $region80
        $region79: #{tpu_custom_call.1} parent=63 // pred_region
          %s1054 = sand.u32 %s186, 1
          %s1055 = scalar_lea.sflag [#allocation13], %s1054
          %s1056 = sand.u32 %s186, 1
          %s1057 = smul.addr %s1056, 16
          %s1058 = scalar_lea.vmem [#allocation12], %s1057
          %1059 = dma.done %s1055, 256
        $region80: #{tpu_custom_call.1} parent=63 // pred_fallthru
          _
      $region64: #{tpu_custom_call.1} parent=5 // pred_fallthru
        _
    $region6: #{tpu_custom_call.1} parent=1 // loop_footer
      %s30 = sadd.s32 1, %s26
    $region7: #{tpu_custom_call.1} parent=1 // loop_footer_branch
      %25 = sbr.rel target = $region3
    $region8: #{tpu_custom_call.1} parent=1 // loop_exit
      _
    %1060 = vsyncpa [#allocation3], 1
    %s1061 = scalar_lea.sflag [#allocation3], 1
    %1062 = vsyncpa %s1061, 1
    %1063 = vsyncpa [#allocation6], 1
    %1064 = vsyncpa [#allocation4], 1
    %s1065 = scalar_lea.sflag [#allocation4], 1
    %1066 = vsyncpa %s1065, 1
    %1067 = vsyncpa [#allocation10], 1
    %s1068 = scalar_lea.sflag [#allocation10], 1
    %1069 = vsyncpa %s1068, 1
    %1070 = vsyncpa [#allocation13], 1
    %s1071 = scalar_lea.sflag [#allocation13], 1
    %1072 = vsyncpa %s1071, 1

</llo_original>
